<compile_context>
chip_gen: v6e
topology: v6e:2x2x1
jax: 0.10.0
libtpu: 0.0.40
codegen_flags: <defaults>
</compile_context>

<pallas_src>
import functools

import jax
import jax.numpy as jnp
from jax.experimental import pallas as pl
from jax.experimental.pallas import tpu as pltpu

_LANE = 128
# dtype itemsize -> native sublane multiple (f32:8, bf16:16, int8/fp8:32)
_SUBLANE = {4: 8, 2: 16, 1: 32}
_TARGET_BLOCK_BYTES = 4 << 20  # ~4 MiB per grid step


def _clip_kernel(x_ref, o_ref, *, min_val, max_val):
    x = x_ref[...]
    o_ref[...] = jnp.minimum(jnp.maximum(x, min_val), max_val).astype(o_ref.dtype)


@functools.partial(jax.jit, static_argnums=(1, 2))
def _clip_pallas_2d(x2d: jax.Array, min_val: float, max_val: float) -> jax.Array:
    rows, lanes = x2d.shape
    dtype = x2d.dtype
    itemsize = jnp.dtype(dtype).itemsize
    sublane = _SUBLANE.get(itemsize, 8)

    target_rows = _TARGET_BLOCK_BYTES // (lanes * itemsize)
    if rows <= target_rows:
        # Single block equal to the full array: always a legal block shape.
        block_rows = rows
    else:
        # Sublane-aligned block; ragged tail handled by pl.cdiv partial block.
        block_rows = max(sublane, (target_rows // sublane) * sublane)

    grid = (pl.cdiv(rows, block_rows),)
    kernel = functools.partial(_clip_kernel, min_val=min_val, max_val=max_val)
    total = rows * lanes

    return pl.pallas_call(
        kernel,
        out_shape=jax.ShapeDtypeStruct((rows, lanes), dtype),
        grid_spec=pltpu.PrefetchScalarGridSpec(
            num_scalar_prefetch=0,
            grid=grid,
            in_specs=[pl.BlockSpec((block_rows, lanes), lambda i: (i, 0))],
            out_specs=pl.BlockSpec((block_rows, lanes), lambda i: (i, 0)),
        ),
        compiler_params=pltpu.CompilerParams(
            dimension_semantics=("parallel",),
            vmem_limit_bytes=32 << 20,
        ),
        input_output_aliases={0: 0},
        cost_estimate=pl.CostEstimate(
            flops=2 * total,
            transcendentals=0,
            bytes_accessed=2 * total * itemsize),
    )(x2d)


def clip_pallas(x: jax.Array, min_val: float, max_val: float) -> jax.Array:
    """Elementwise clip(x, min_val, max_val) via a Pallas TPU kernel."""
    orig_shape = x.shape
    total = x.size
    if total == 0:
        return x
    if total % _LANE != 0:
        # TODO(synk): ragged (non-128-multiple) sizes fall back to XLA's fused
        # clip; padding to a lane-dense view would cost a full extra HBM pass
        # on this memory-bound op.
        return jnp.clip(x, min_val, max_val)

    x2d = x.reshape(total // _LANE, _LANE)
    out2d = _clip_pallas_2d(x2d, float(min_val), float(max_val))
    return out2d.reshape(orig_shape)


class ClipPallas:
    """Mirror of the PyTorch `Clip` module (no parameters)."""

    def __init__(self, min: float, max: float):
        self.min = min
        self.max = max

    def __call__(self, x: jax.Array) -> jax.Array:
        return clip_pallas(x, self.min, self.max)


if __name__ == "__main__":
    key = jax.random.PRNGKey(0)
    # NCHW-style input: batch=2, channels=4, spatial=16x16 (2048 elems, f32).
    x = jax.random.normal(key, (2, 4, 16, 16), dtype=jnp.float32) * 2.0

    # Reference computed BEFORE the kernel call (kernel aliases its input).
    ref = jnp.clip(x, -0.5, 0.5)
    ref = jax.block_until_ready(ref)

    module = ClipPallas(min=-0.5, max=0.5)
    out = module(x)
    out = jax.block_until_ready(out)

    assert out.shape == x.shape and out.dtype == x.dtype
    assert jnp.max(jnp.abs(out - ref)) == 0.0

    print("KERNEL_OK")
</pallas_src>

<mosaic_0001>
module attributes {stable_mosaic.version = 11 : i64} {
  func.func @_clip_kernel(%arg0: i32, %arg1: memref<16x128xf32, #tpu.memory_space<vmem>>, %arg2: memref<16x128xf32, #tpu.memory_space<vmem>>) attributes {dimension_semantics = [#tpu.dimension_semantics<parallel>], iteration_bounds = array<i64: 1>, scalar_prefetch = 0 : i64, scratch_operands = 0 : i64, tpu.core_type = #tpu.core_type<tc>, window_params = [{transform_indices = @transform_0, window_bounds = array<i64: 16, 128>}, {transform_indices = @transform_1, window_bounds = array<i64: 16, 128>}]} {
    %c0 = arith.constant 0 : index
    %c0_0 = arith.constant 0 : index
    %0 = vector.load %arg1[%c0, %c0_0] : memref<16x128xf32, #tpu.memory_space<vmem>>, vector<16x128xf32>
    %cst = arith.constant -5.000000e-01 : f32
    %1 = vector.broadcast %cst : f32 to vector<16x128xf32>
    %2 = arith.maximumf %0, %1 : vector<16x128xf32>
    %cst_1 = arith.constant 5.000000e-01 : f32
    %3 = vector.broadcast %cst_1 : f32 to vector<16x128xf32>
    %4 = arith.minimumf %2, %3 : vector<16x128xf32>
    %c0_2 = arith.constant 0 : index
    %c0_3 = arith.constant 0 : index
    %5 = vector.load %arg2[%c0_2, %c0_3] : memref<16x128xf32, #tpu.memory_space<vmem>>, vector<16x128xf32>
    tpu.vector_store %arg2[%c0_2, %c0_3], %4 {strides = array<i32>} : memref<16x128xf32, #tpu.memory_space<vmem>>, vector<16x128xf32>,
    return
  }
  func.func @transform_0(%arg0: i32) -> (i32, i32) {
    %c0_i32 = arith.constant 0 : i32
    %c0_i32_0 = arith.constant 0 : i32
    return %arg0, %c0_i32 : i32, i32
  }
  func.func @transform_1(%arg0: i32) -> (i32, i32) {
    %c0_i32 = arith.constant 0 : i32
    %c0_i32_0 = arith.constant 0 : i32
    return %arg0, %c0_i32 : i32, i32
  }
}

</mosaic_0001>

<llo_original>
// kernel: _clip_pallas_2d.1
$region0: #{_clip_pallas_2d.1}
  #allocation0 [shape = 'u32[]', space=smem, size = 0x4, offset = 0x4, fixed_abs, tag = 'smem constant byte address 0x4 - core index']
  #allocation1 [shape = 'u32[144,128]{1,0:T(1,128)}', space=vmem, size = 0x12000, scoped, tag = 'internal scratch']
  %s0 = inlined_call_operand.hbm [shape: f32[16,128], index: 0, kind: input, shape index: {}, may-alias: {0,1}]
  %s1 = inlined_call_operand.hbm [shape: f32[16,128], index: 1, kind: output, shape index: {}, may-alias: {0,1}]
  %s2 = sld [smem:[#allocation0]]
  $region18: #{_clip_pallas_2d.1} parent=0
    _
  %s4 = ssub.s32 1, %s2
  %s5 = scalar_select 0, %s4, %s2
  $region1: #{_clip_pallas_2d.1} parent=0
    #allocation2 [shape = 'u8[8192]{0}', space=vmem, size = 0x2000, scoped, tag = 'input window, operand 0, single buffered']
    #allocation3 [shape = 's32[1]{0}', space=sflag, size = 0x4, scoped, tag = 'scoped memory for _clip_pallas_2d.1']
    #allocation4 [shape = 's32[1]{0}', space=sflag, size = 0x4, scoped, tag = 'scoped memory for _clip_pallas_2d.1']
    #allocation5 [shape = 'u8[8192]{0}', space=vmem, size = 0x2000, scoped, tag = 'output window, operand 0, single buffered']
    %6 = vsyncpa [#allocation3], 0
    %7 = vsyncpa [#allocation4], 0
    // Predicated region
    $region2: #{_clip_pallas_2d.1} parent=1 // pred_check
      _
    $region3: #{_clip_pallas_2d.1} parent=1 // pred_check_branch
      %9 = sbr.rel (0) target = $region5
    $region4: #{_clip_pallas_2d.1} parent=1 // pred_region
      %s11 = ssub.s32 256, 256
      %12 = vsyncadd [#allocation3], %s11
      %s13 = sshll.u32 [#allocation2], 4
      %s14 = int_to_ptr.vmem [resolvable:$true] %s13
      %19 = dma.hbm_to_vmem [thread:$0]  %s0, 256, %s14, [#allocation3], 128, 128, 8
    $region5: #{_clip_pallas_2d.1} parent=1 // pred_fallthru
      _
    // Predicated region
    $region6: #{_clip_pallas_2d.1} parent=1 // pred_check
      _
    $region7: #{_clip_pallas_2d.1} parent=1 // pred_check_branch
      %21 = sbr.rel (0) target = $region9
    $region8: #{_clip_pallas_2d.1} parent=1 // pred_region
      %22 = dma.done [#allocation3], 256
    $region9: #{_clip_pallas_2d.1} parent=1 // pred_fallthru
      _
    %v23 = vld [vmem:[#allocation2] sm:$0xff]
    %v24 = vld [vmem:[#allocation2 + $0x8] sm:$0xff]
    %v25 = vmax.f32 %v23, -0.5
    %v26 = vmax.f32 %v24, -0.5
    %v27 = vmin.f32 %v25, 0.5
    %v28 = vmin.f32 %v26, 0.5
    %29 = vst [vmem:[#allocation5] sm:$0xff] %v27
    %30 = vst [vmem:[#allocation5 + $0x8] sm:$0xff] %v28
    // Predicated region
    $region10: #{_clip_pallas_2d.1} parent=1 // pred_check
      _
    $region11: #{_clip_pallas_2d.1} parent=1 // pred_check_branch
      %32 = sbr.rel (0) target = $region13
    $region12: #{_clip_pallas_2d.1} parent=1 // pred_region
      %s34 = ssub.s32 256, 256
      %35 = vsyncadd [#allocation4], %s34
      %s36 = sshll.u32 [#allocation5], 4
      %s37 = int_to_ptr.vmem [resolvable:$true] %s36
      %42 = dma.vmem_to_hbm [thread:$0]  %s37, 256, %s1, [#allocation4], 128, 128, 8
    $region13: #{_clip_pallas_2d.1} parent=1 // pred_fallthru
      _
    // Predicated region
    $region14: #{_clip_pallas_2d.1} parent=1 // pred_check
      _
    $region15: #{_clip_pallas_2d.1} parent=1 // pred_check_branch
      %44 = sbr.rel (0) target = $region17
    $region16: #{_clip_pallas_2d.1} parent=1 // pred_region
      %45 = dma.done [#allocation4], 256
    $region17: #{_clip_pallas_2d.1} parent=1 // pred_fallthru
      _
    %46 = vsyncpa [#allocation3], 1
    %47 = vsyncpa [#allocation4], 1

</llo_original>
